<compile_context>
chip_gen: v5e
topology: v5e:2x2
jax: 0.10.0
libtpu: 0.0.40
codegen_flags: <defaults>
</compile_context>

<pallas_src>
import functools

import jax
import jax.numpy as jnp
from jax.experimental import pallas as pl
from jax.experimental.pallas import tpu as pltpu

LANE = 128
SUBLANE = 16  # channel padding granularity (f32 sublane=8, bf16 packing=16)


def _round_up(x, m):
    return (x + m - 1) // m * m


def _wavenet_fused_kernel(x_ref, *refs, n_layers, ksize, dilations, tile, wb):
    """Fused WavenetSimple forward for one (tile, batch) grid point.

    refs layout (after x_ref):
      inputs : first_w (CH_P, CIN_P) bf16, first_b (CH_P, 1) f32,
               [conv_i_w (K, CH_P, CH_P) bf16, conv_i_b (CH_P, 1) f32] * n_layers,
               last_w (COUT_P, CH_P) bf16, last_b (COUT_P, 1) f32
      outputs: out_ref (1, COUT_P, TILE), hid_ref (1, CH_P, TILE)
      scratch: buf0, buf1 (CH_P, WB_ALLOC) f32   (ping-pong activations)

    Only the first `wb` lanes of the scratch buffers are ever written; the
    extra allocation just keeps the shifted tap slices in-bounds.  Lanes that
    read past the written region can only influence output lanes >= TILE,
    which are never stored.
    """
    fw_ref, fb_ref = refs[0], refs[1]
    layer_refs = refs[2:2 + 2 * n_layers]
    lw_ref, lb_ref = refs[2 + 2 * n_layers], refs[3 + 2 * n_layers]
    out_ref, hid_ref = refs[4 + 2 * n_layers], refs[5 + 2 * n_layers]
    buf0, buf1 = refs[6 + 2 * n_layers], refs[7 + 2 * n_layers]

    # --- first_conv (1x1): bf16 operands on the MXU, f32 accumulation --------
    x = x_ref[0, 0, :, :]                                      # (CIN_P, WB) bf16
    h0 = jnp.dot(fw_ref[...], x, preferred_element_type=jnp.float32) + fb_ref[...]
    buf0[:, :wb] = h0

    bufs = (buf0, buf1)

    # --- dilated layers: K accumulated dots per layer (no concat temp) --------
    for i, d in enumerate(dilations):
        src = bufs[i % 2]
        dst = bufs[(i + 1) % 2]
        w_ref = layer_refs[2 * i]
        b_ref = layer_refs[2 * i + 1]

        acc = None
        for k in range(ksize):
            # Tap k: out[:, l] uses src[:, l + k*d].  Static lane slice; the
            # slice end k*d + wb stays inside the over-allocated buffer.
            tap = src[:, k * d:k * d + wb].astype(jnp.bfloat16)
            part = jnp.dot(w_ref[k], tap, preferred_element_type=jnp.float32)
            acc = part if acc is None else acc + part
        dst[:, :wb] = jnp.maximum(acc + b_ref[...], 0.0)       # bias + ReLU in f32

    final = bufs[n_layers % 2]
    h_last = final[:, :tile]                                   # (CH_P, TILE) f32

    # --- outputs: hidden = post-ReLU last-layer activations; out = last_conv --
    hid_ref[0, :, :] = h_last.astype(hid_ref.dtype)
    out = jnp.dot(lw_ref[...], h_last.astype(jnp.bfloat16),
                  preferred_element_type=jnp.float32) + lb_ref[...]
    out_ref[0, :, :] = out.astype(out_ref.dtype)


def wavenet_simple_forward(x, params, dilations, kernel_size):
    """Mirrors WavenetSimple.forward: returns (last_conv(x), x)."""
    B, C_in, L_in = x.shape
    CH = params["first_w"].shape[0]
    C_out = params["last_w"].shape[0]
    K = kernel_size
    n_layers = len(dilations)

    R = (K - 1) * sum(dilations)          # total receptive-field shrink (halo)
    L_valid = L_in - R
    assert L_valid > 0, "input too short for this receptive field"

    # Channel padding (sublane / bf16-packing friendly).
    CIN_P = _round_up(C_in, SUBLANE)
    CH_P = _round_up(CH, SUBLANE)
    COUT_P = _round_up(C_out, SUBLANE)

    # ---- generation-aware VMEM budget & tile size ----------------------------
    try:
        vmem_cap = int(pltpu.get_tpu_info().vmem_capacity_bytes)
    except Exception:
        vmem_cap = 64 * 1024 * 1024       # conservative default (v7x-sized)
    vmem_limit = max(int(vmem_cap * 0.85), 16 * 1024 * 1024)

    W_need = _round_up(L_valid, LANE)
    target_tile = 512 if vmem_cap <= 64 * 1024 * 1024 else 1024
    TILE = min(target_tile, W_need)

    def _vmem_est(tile):
        wb_ = _round_up(tile + R, LANE)
        wba = wb_ + _round_up(R, LANE)
        scratch = 2 * CH_P * wba * 4                                  # f32 ping-pong
        io = 2 * (CIN_P * wb_ * 2 + (CH_P + COUT_P) * tile * 4)       # dbl-buffered blocks
        wts = 2 * ((CH_P * CIN_P + COUT_P * CH_P
                    + n_layers * K * CH_P * CH_P) * 2                 # bf16 weights
                   + (CH_P * (n_layers + 1) + COUT_P) * 4)            # f32 biases
        temps = 4 * CH_P * wb_ * 4                                    # tap casts / acc
        return scratch + io + wts + temps

    while TILE > LANE and _vmem_est(TILE) > 0.6 * vmem_limit:
        TILE = max(LANE, (TILE // 2) // LANE * LANE)

    n_tiles = pl.cdiv(L_valid, TILE)
    W_out = n_tiles * TILE
    WB = _round_up(TILE + R, LANE)        # lanes computed per tile (tile + halo)
    EXTRA = _round_up(R, LANE)            # slack so every tap slice is in-bounds
    WB_ALLOC = WB + EXTRA

    # ---- overlapping (tile + halo) input windows, built once in the wrapper --
    L_pad = (n_tiles - 1) * TILE + WB     # >= L_in by construction
    x_p = jnp.pad(x, ((0, 0), (0, CIN_P - C_in), (0, L_pad - L_in)))
    idx = jnp.arange(n_tiles)[:, None] * TILE + jnp.arange(WB)[None, :]
    x_tiles = jnp.transpose(x_p[:, :, idx], (0, 2, 1, 3)).astype(jnp.bfloat16)

    # ---- weights: bf16 matmul operands, f32 biases, zero-padded channels -----
    def pad2(a, r, c):
        return jnp.pad(a, ((0, r - a.shape[0]), (0, c - a.shape[1])))

    fw = pad2(params["first_w"].reshape(CH, C_in), CH_P, CIN_P).astype(jnp.bfloat16)
    fb = jnp.pad(params["first_b"], (0, CH_P - CH)).reshape(CH_P, 1).astype(jnp.float32)
    lw = pad2(params["last_w"].reshape(C_out, CH), COUT_P, CH_P).astype(jnp.bfloat16)
    lb = jnp.pad(params["last_b"], (0, COUT_P - C_out)).reshape(COUT_P, 1).astype(jnp.float32)

    inputs = [x_tiles, fw, fb]
    in_specs = [
        pl.BlockSpec((1, 1, CIN_P, WB), lambda t, b: (b, t, 0, 0)),
        pl.BlockSpec(fw.shape, lambda t, b: (0, 0)),
        pl.BlockSpec(fb.shape, lambda t, b: (0, 0)),
    ]
    for li in range(n_layers):
        w = jnp.transpose(params[f"conv{li}_w"], (2, 0, 1))           # (K, CH, CH)
        w = jnp.pad(w, ((0, 0), (0, CH_P - CH), (0, CH_P - CH))).astype(jnp.bfloat16)
        bia = jnp.pad(params[f"conv{li}_b"], (0, CH_P - CH)).reshape(CH_P, 1)
        bia = bia.astype(jnp.float32)
        inputs += [w, bia]
        in_specs += [pl.BlockSpec(w.shape, lambda t, b: (0, 0, 0)),
                     pl.BlockSpec(bia.shape, lambda t, b: (0, 0))]
    inputs += [lw, lb]
    in_specs += [pl.BlockSpec(lw.shape, lambda t, b: (0, 0)),
                 pl.BlockSpec(lb.shape, lambda t, b: (0, 0))]

    out_shape = (jax.ShapeDtypeStruct((B, COUT_P, W_out), x.dtype),
                 jax.ShapeDtypeStruct((B, CH_P, W_out), x.dtype))
    out_specs = (pl.BlockSpec((1, COUT_P, TILE), lambda t, b: (b, 0, t)),
                 pl.BlockSpec((1, CH_P, TILE), lambda t, b: (b, 0, t)))

    kernel = functools.partial(
        _wavenet_fused_kernel, n_layers=n_layers, ksize=K,
        dilations=tuple(int(d) for d in dilations), tile=TILE, wb=WB)

    flops = 2 * B * n_tiles * (CIN_P * CH_P * WB
                               + n_layers * K * CH_P * CH_P * WB
                               + CH_P * COUT_P * TILE)
    bytes_accessed = (sum(int(a.size) * a.dtype.itemsize for a in inputs)
                      + (B * COUT_P * W_out + B * CH_P * W_out) * x.dtype.itemsize)
    cost = pl.CostEstimate(flops=int(flops), transcendentals=0,
                           bytes_accessed=int(bytes_accessed))

    out_pad, hid_pad = pl.pallas_call(
        kernel,
        out_shape=out_shape,
        grid=(n_tiles, B),
        in_specs=in_specs,
        out_specs=out_specs,
        scratch_shapes=[pltpu.VMEM((CH_P, WB_ALLOC), jnp.float32),
                        pltpu.VMEM((CH_P, WB_ALLOC), jnp.float32)],
        compiler_params=pltpu.CompilerParams(
            dimension_semantics=("parallel", "parallel"),
            vmem_limit_bytes=int(vmem_limit)),
        cost_estimate=cost,
    )(*inputs)

    return out_pad[:, :C_out, :L_valid], hid_pad[:, :CH, :L_valid]


# ---------------------------------------------------------------------------
# Pure-JAX references (for correctness check of the Pallas kernel).
#   quantize=False : exact f32 path (loose tolerance vs the bf16 kernel)
#   quantize=True  : matmul operands quantized to bf16 like the kernel (tight)
# ---------------------------------------------------------------------------
def _q16(a):
    return a.astype(jnp.bfloat16).astype(jnp.float32)


def _ref_conv1d(x, w, b, dilation, quantize):
    B, C_in, L_in = x.shape
    C_out, _, K = w.shape
    L_out = L_in - dilation * (K - 1)
    out = jnp.zeros((B, C_out, L_out), jnp.float32)
    for k in range(K):
        s = k * dilation
        wk = w[:, :, k]
        xs = x[:, :, s:s + L_out]
        if quantize:
            wk, xs = _q16(wk), _q16(xs)
        out = out + jnp.einsum("oi,bil->bol", wk, xs)
    return out + b[None, :, None]


def _ref_forward(x, params, dilations, quantize=False):
    x = _ref_conv1d(x, params["first_w"], params["first_b"], 1, quantize)
    for i, rate in enumerate(dilations):
        x = jnp.maximum(_ref_conv1d(x, params[f"conv{i}_w"],
                                    params[f"conv{i}_b"], rate, quantize), 0.0)
    out = _ref_conv1d(x, params["last_w"], params["last_b"], 1, quantize)
    return out, x


# ---------------------------------------------------------------------------
# Deterministic parameter init (shapes match the PyTorch module's __init__).
# ---------------------------------------------------------------------------
def init_params(key, num_channels, ch_mult, kernel_size, dilations):
    inp_ch = out_ch = num_channels
    ch = int(ch_mult * inp_ch)
    params = {}

    def conv_init(key, c_out, c_in, k):
        k1, k2 = jax.random.split(key)
        bound = 1.0 / jnp.sqrt(c_in * k)  # PyTorch Conv1d default init bound
        w = jax.random.uniform(k1, (c_out, c_in, k), jnp.float32, -bound, bound)
        b = jax.random.uniform(k2, (c_out,), jnp.float32, -bound, bound)
        return w, b

    keys = jax.random.split(key, len(dilations) + 2)
    params["first_w"], params["first_b"] = conv_init(keys[0], ch, inp_ch, 1)
    for i, _ in enumerate(dilations):
        params[f"conv{i}_w"], params[f"conv{i}_b"] = conv_init(
            keys[i + 1], ch, ch, kernel_size)
    params["last_w"], params["last_b"] = conv_init(keys[-1], out_ch, ch, 1)
    return params


if __name__ == "__main__":
    # Small synthetic "args": num_channels=4, ch_mult=2, kernel_size=2,
    # dilations=[1,2,4], groups=1, conv1x1_groups=1, activation=ReLU, p_drop=0.
    num_channels = 4
    ch_mult = 2
    kernel_size = 2
    dilations = [1, 2, 4]
    batch = 2
    seq_len = 64

    key = jax.random.PRNGKey(0)
    k_param, k_data = jax.random.split(key)
    params = init_params(k_param, num_channels, ch_mult, kernel_size, dilations)
    x = jax.random.normal(k_data, (batch, num_channels, seq_len), jnp.float32)

    out, hidden = wavenet_simple_forward(x, params, dilations, kernel_size)
    out = jax.block_until_ready(out)
    hidden = jax.block_until_ready(hidden)

    ref_out, ref_hid = _ref_forward(x, params, dilations, quantize=False)
    ref_out_q, ref_hid_q = _ref_forward(x, params, dilations, quantize=True)

    assert out.shape == ref_out.shape, (out.shape, ref_out.shape)
    assert hidden.shape == ref_hid.shape, (hidden.shape, ref_hid.shape)
    # Tight check vs the reference that quantizes matmul operands to bf16
    # exactly like the kernel (f32 accumulation in both).
    assert jnp.allclose(out, ref_out_q, atol=1e-2, rtol=1e-2)
    assert jnp.allclose(hidden, ref_hid_q, atol=1e-2, rtol=1e-2)
    # Looser check vs the pure-f32 reference (bf16 operand quantization only).
    assert jnp.allclose(out, ref_out, atol=6e-2, rtol=6e-2)
    assert jnp.allclose(hidden, ref_hid, atol=6e-2, rtol=6e-2)

    print("KERNEL_OK")
</pallas_src>

<mosaic_0001>
module attributes {stable_mosaic.version = 11 : i64} {
  func.func @_wavenet_fused_kernel(%arg0: i32, %arg1: i32, %arg2: memref<1x1x16x256xbf16, #tpu.memory_space<vmem>>, %arg3: memref<16x16xbf16, #tpu.memory_space<vmem>>, %arg4: memref<16x1xf32, #tpu.memory_space<vmem>>, %arg5: memref<2x16x16xbf16, #tpu.memory_space<vmem>>, %arg6: memref<16x1xf32, #tpu.memory_space<vmem>>, %arg7: memref<2x16x16xbf16, #tpu.memory_space<vmem>>, %arg8: memref<16x1xf32, #tpu.memory_space<vmem>>, %arg9: memref<2x16x16xbf16, #tpu.memory_space<vmem>>, %arg10: memref<16x1xf32, #tpu.memory_space<vmem>>, %arg11: memref<16x16xbf16, #tpu.memory_space<vmem>>, %arg12: memref<16x1xf32, #tpu.memory_space<vmem>>, %arg13: memref<1x16x128xf32, #tpu.memory_space<vmem>>, %arg14: memref<1x16x128xf32, #tpu.memory_space<vmem>>, %arg15: memref<16x384xf32, #tpu.memory_space<vmem>>, %arg16: memref<16x384xf32, #tpu.memory_space<vmem>>) attributes {dimension_semantics = [#tpu.dimension_semantics<parallel>, #tpu.dimension_semantics<parallel>], iteration_bounds = array<i64: 1, 2>, scalar_prefetch = 0 : i64, scratch_operands = 2 : i64, tpu.core_type = #tpu.core_type<tc>, window_params = [{transform_indices = @transform_0, window_bounds = array<i64: 1, 1, 16, 256>}, {pipeline_mode = #tpu.pipeline_mode<synchronous>, transform_indices = @transform_1, window_bounds = array<i64: 16, 16>}, {pipeline_mode = #tpu.pipeline_mode<synchronous>, transform_indices = @transform_2, window_bounds = array<i64: 16, 1>}, {pipeline_mode = #tpu.pipeline_mode<synchronous>, transform_indices = @transform_3, window_bounds = array<i64: 2, 16, 16>}, {pipeline_mode = #tpu.pipeline_mode<synchronous>, transform_indices = @transform_4, window_bounds = array<i64: 16, 1>}, {pipeline_mode = #tpu.pipeline_mode<synchronous>, transform_indices = @transform_5, window_bounds = array<i64: 2, 16, 16>}, {pipeline_mode = #tpu.pipeline_mode<synchronous>, transform_indices = @transform_6, window_bounds = array<i64: 16, 1>}, {pipeline_mode = #tpu.pipeline_mode<synchronous>, transform_indices = @transform_7, window_bounds = array<i64: 2, 16, 16>}, {pipeline_mode = #tpu.pipeline_mode<synchronous>, transform_indices = @transform_8, window_bounds = array<i64: 16, 1>}, {pipeline_mode = #tpu.pipeline_mode<synchronous>, transform_indices = @transform_9, window_bounds = array<i64: 16, 16>}, {pipeline_mode = #tpu.pipeline_mode<synchronous>, transform_indices = @transform_10, window_bounds = array<i64: 16, 1>}, {transform_indices = @transform_11, window_bounds = array<i64: 1, 16, 128>}, {transform_indices = @transform_12, window_bounds = array<i64: 1, 16, 128>}]} {
    %c0 = arith.constant 0 : index
    %c0_0 = arith.constant 0 : index
    %c0_1 = arith.constant 0 : index
    %c0_2 = arith.constant 0 : index
    %0 = vector.load %arg2[%c0, %c0_0, %c0_1, %c0_2] : memref<1x1x16x256xbf16, #tpu.memory_space<vmem>>, vector<1x1x16x256xbf16>
    %1 = vector.shape_cast %0 : vector<1x1x16x256xbf16> to vector<16x256xbf16>
    %c0_3 = arith.constant 0 : index
    %c0_4 = arith.constant 0 : index
    %2 = vector.load %arg3[%c0_3, %c0_4] : memref<16x16xbf16, #tpu.memory_space<vmem>>, vector<16x16xbf16>
    %cst = arith.constant dense<0.000000e+00> : vector<16x256xf32>
    %3 = tpu.matmul %2, %1, %cst {dimension_numbers = #tpu.dot_dimension_numbers<[1], [0], [0], [1], [0, 0, 1, 1], [], []>} : vector<16x16xbf16>, vector<16x256xbf16>, vector<16x256xf32> -> vector<16x256xf32>
    %c0_5 = arith.constant 0 : index
    %c0_6 = arith.constant 0 : index
    %4 = vector.load %arg4[%c0_5, %c0_6] : memref<16x1xf32, #tpu.memory_space<vmem>>, vector<16x1xf32>
    %5 = vector.broadcast %4 : vector<16x1xf32> to vector<16x256xf32>
    %6 = arith.addf %3, %5 : vector<16x256xf32>
    %c0_7 = arith.constant 0 : index
    %c0_8 = arith.constant 0 : index
    %7 = vector.load %arg15[%c0_7, %c0_8] : memref<16x384xf32, #tpu.memory_space<vmem>>, vector<16x256xf32>
    tpu.vector_store %arg15[%c0_7, %c0_8], %6 {strides = array<i32>} : memref<16x384xf32, #tpu.memory_space<vmem>>, vector<16x256xf32>,
    %c0_9 = arith.constant 0 : index
    %c0_10 = arith.constant 0 : index
    %8 = vector.load %arg15[%c0_9, %c0_10] : memref<16x384xf32, #tpu.memory_space<vmem>>, vector<16x256xf32>
    %9 = arith.truncf %8 : vector<16x256xf32> to vector<16x256xbf16>
    %c0_11 = arith.constant 0 : index
    %c0_12 = arith.constant 0 : index
    %c0_13 = arith.constant 0 : index
    %10 = vector.load %arg5[%c0_11, %c0_12, %c0_13] : memref<2x16x16xbf16, #tpu.memory_space<vmem>>, vector<1x16x16xbf16>
    %11 = vector.shape_cast %10 : vector<1x16x16xbf16> to vector<16x16xbf16>
    %cst_14 = arith.constant dense<0.000000e+00> : vector<16x256xf32>
    %12 = tpu.matmul %11, %9, %cst_14 {dimension_numbers = #tpu.dot_dimension_numbers<[1], [0], [0], [1], [0, 0, 1, 1], [], []>} : vector<16x16xbf16>, vector<16x256xbf16>, vector<16x256xf32> -> vector<16x256xf32>
    %c0_15 = arith.constant 0 : index
    %c1 = arith.constant 1 : index
    %13 = vector.load %arg15[%c0_15, %c1] : memref<16x384xf32, #tpu.memory_space<vmem>>, vector<16x256xf32>
    %14 = arith.truncf %13 : vector<16x256xf32> to vector<16x256xbf16>
    %c1_16 = arith.constant 1 : index
    %c0_17 = arith.constant 0 : index
    %c0_18 = arith.constant 0 : index
    %15 = vector.load %arg5[%c1_16, %c0_17, %c0_18] : memref<2x16x16xbf16, #tpu.memory_space<vmem>>, vector<1x16x16xbf16>
    %16 = vector.shape_cast %15 : vector<1x16x16xbf16> to vector<16x16xbf16>
    %cst_19 = arith.constant dense<0.000000e+00> : vector<16x256xf32>
    %17 = tpu.matmul %16, %14, %cst_19 {dimension_numbers = #tpu.dot_dimension_numbers<[1], [0], [0], [1], [0, 0, 1, 1], [], []>} : vector<16x16xbf16>, vector<16x256xbf16>, vector<16x256xf32> -> vector<16x256xf32>
    %18 = arith.addf %12, %17 : vector<16x256xf32>
    %c0_20 = arith.constant 0 : index
    %c0_21 = arith.constant 0 : index
    %19 = vector.load %arg6[%c0_20, %c0_21] : memref<16x1xf32, #tpu.memory_space<vmem>>, vector<16x1xf32>
    %20 = vector.broadcast %19 : vector<16x1xf32> to vector<16x256xf32>
    %21 = arith.addf %18, %20 : vector<16x256xf32>
    %cst_22 = arith.constant 0.000000e+00 : f32
    %22 = vector.broadcast %cst_22 : f32 to vector<16x256xf32>
    %23 = arith.maximumf %21, %22 : vector<16x256xf32>
    %c0_23 = arith.constant 0 : index
    %c0_24 = arith.constant 0 : index
    %24 = vector.load %arg16[%c0_23, %c0_24] : memref<16x384xf32, #tpu.memory_space<vmem>>, vector<16x256xf32>
    tpu.vector_store %arg16[%c0_23, %c0_24], %23 {strides = array<i32>} : memref<16x384xf32, #tpu.memory_space<vmem>>, vector<16x256xf32>,
    %c0_25 = arith.constant 0 : index
    %c0_26 = arith.constant 0 : index
    %25 = vector.load %arg16[%c0_25, %c0_26] : memref<16x384xf32, #tpu.memory_space<vmem>>, vector<16x256xf32>
    %26 = arith.truncf %25 : vector<16x256xf32> to vector<16x256xbf16>
    %c0_27 = arith.constant 0 : index
    %c0_28 = arith.constant 0 : index
    %c0_29 = arith.constant 0 : index
    %27 = vector.load %arg7[%c0_27, %c0_28, %c0_29] : memref<2x16x16xbf16, #tpu.memory_space<vmem>>, vector<1x16x16xbf16>
    %28 = vector.shape_cast %27 : vector<1x16x16xbf16> to vector<16x16xbf16>
    %cst_30 = arith.constant dense<0.000000e+00> : vector<16x256xf32>
    %29 = tpu.matmul %28, %26, %cst_30 {dimension_numbers = #tpu.dot_dimension_numbers<[1], [0], [0], [1], [0, 0, 1, 1], [], []>} : vector<16x16xbf16>, vector<16x256xbf16>, vector<16x256xf32> -> vector<16x256xf32>
    %c0_31 = arith.constant 0 : index
    %c2 = arith.constant 2 : index
    %30 = vector.load %arg16[%c0_31, %c2] : memref<16x384xf32, #tpu.memory_space<vmem>>, vector<16x256xf32>
    %31 = arith.truncf %30 : vector<16x256xf32> to vector<16x256xbf16>
    %c1_32 = arith.constant 1 : index
    %c0_33 = arith.constant 0 : index
    %c0_34 = arith.constant 0 : index
    %32 = vector.load %arg7[%c1_32, %c0_33, %c0_34] : memref<2x16x16xbf16, #tpu.memory_space<vmem>>, vector<1x16x16xbf16>
    %33 = vector.shape_cast %32 : vector<1x16x16xbf16> to vector<16x16xbf16>
    %cst_35 = arith.constant dense<0.000000e+00> : vector<16x256xf32>
    %34 = tpu.matmul %33, %31, %cst_35 {dimension_numbers = #tpu.dot_dimension_numbers<[1], [0], [0], [1], [0, 0, 1, 1], [], []>} : vector<16x16xbf16>, vector<16x256xbf16>, vector<16x256xf32> -> vector<16x256xf32>
    %35 = arith.addf %29, %34 : vector<16x256xf32>
    %c0_36 = arith.constant 0 : index
    %c0_37 = arith.constant 0 : index
    %36 = vector.load %arg8[%c0_36, %c0_37] : memref<16x1xf32, #tpu.memory_space<vmem>>, vector<16x1xf32>
    %37 = vector.broadcast %36 : vector<16x1xf32> to vector<16x256xf32>
    %38 = arith.addf %35, %37 : vector<16x256xf32>
    %cst_38 = arith.constant 0.000000e+00 : f32
    %39 = vector.broadcast %cst_38 : f32 to vector<16x256xf32>
    %40 = arith.maximumf %38, %39 : vector<16x256xf32>
    %c0_39 = arith.constant 0 : index
    %c0_40 = arith.constant 0 : index
    %41 = vector.load %arg15[%c0_39, %c0_40] : memref<16x384xf32, #tpu.memory_space<vmem>>, vector<16x256xf32>
    tpu.vector_store %arg15[%c0_39, %c0_40], %40 {strides = array<i32>} : memref<16x384xf32, #tpu.memory_space<vmem>>, vector<16x256xf32>,
    %c0_41 = arith.constant 0 : index
    %c0_42 = arith.constant 0 : index
    %42 = vector.load %arg15[%c0_41, %c0_42] : memref<16x384xf32, #tpu.memory_space<vmem>>, vector<16x256xf32>
    %43 = arith.truncf %42 : vector<16x256xf32> to vector<16x256xbf16>
    %c0_43 = arith.constant 0 : index
    %c0_44 = arith.constant 0 : index
    %c0_45 = arith.constant 0 : index
    %44 = vector.load %arg9[%c0_43, %c0_44, %c0_45] : memref<2x16x16xbf16, #tpu.memory_space<vmem>>, vector<1x16x16xbf16>
    %45 = vector.shape_cast %44 : vector<1x16x16xbf16> to vector<16x16xbf16>
    %cst_46 = arith.constant dense<0.000000e+00> : vector<16x256xf32>
    %46 = tpu.matmul %45, %43, %cst_46 {dimension_numbers = #tpu.dot_dimension_numbers<[1], [0], [0], [1], [0, 0, 1, 1], [], []>} : vector<16x16xbf16>, vector<16x256xbf16>, vector<16x256xf32> -> vector<16x256xf32>
    %c0_47 = arith.constant 0 : index
    %c4 = arith.constant 4 : index
    %47 = vector.load %arg15[%c0_47, %c4] : memref<16x384xf32, #tpu.memory_space<vmem>>, vector<16x256xf32>
    %48 = arith.truncf %47 : vector<16x256xf32> to vector<16x256xbf16>
    %c1_48 = arith.constant 1 : index
    %c0_49 = arith.constant 0 : index
    %c0_50 = arith.constant 0 : index
    %49 = vector.load %arg9[%c1_48, %c0_49, %c0_50] : memref<2x16x16xbf16, #tpu.memory_space<vmem>>, vector<1x16x16xbf16>
    %50 = vector.shape_cast %49 : vector<1x16x16xbf16> to vector<16x16xbf16>
    %cst_51 = arith.constant dense<0.000000e+00> : vector<16x256xf32>
    %51 = tpu.matmul %50, %48, %cst_51 {dimension_numbers = #tpu.dot_dimension_numbers<[1], [0], [0], [1], [0, 0, 1, 1], [], []>} : vector<16x16xbf16>, vector<16x256xbf16>, vector<16x256xf32> -> vector<16x256xf32>
    %52 = arith.addf %46, %51 : vector<16x256xf32>
    %c0_52 = arith.constant 0 : index
    %c0_53 = arith.constant 0 : index
    %53 = vector.load %arg10[%c0_52, %c0_53] : memref<16x1xf32, #tpu.memory_space<vmem>>, vector<16x1xf32>
    %54 = vector.broadcast %53 : vector<16x1xf32> to vector<16x256xf32>
    %55 = arith.addf %52, %54 : vector<16x256xf32>
    %cst_54 = arith.constant 0.000000e+00 : f32
    %56 = vector.broadcast %cst_54 : f32 to vector<16x256xf32>
    %57 = arith.maximumf %55, %56 : vector<16x256xf32>
    %c0_55 = arith.constant 0 : index
    %c0_56 = arith.constant 0 : index
    %58 = vector.load %arg16[%c0_55, %c0_56] : memref<16x384xf32, #tpu.memory_space<vmem>>, vector<16x256xf32>
    tpu.vector_store %arg16[%c0_55, %c0_56], %57 {strides = array<i32>} : memref<16x384xf32, #tpu.memory_space<vmem>>, vector<16x256xf32>,
    %c0_57 = arith.constant 0 : index
    %c0_58 = arith.constant 0 : index
    %59 = vector.load %arg16[%c0_57, %c0_58] : memref<16x384xf32, #tpu.memory_space<vmem>>, vector<16x128xf32>
    %c0_59 = arith.constant 0 : index
    %c0_60 = arith.constant 0 : index
    %c0_61 = arith.constant 0 : index
    %60 = vector.load %arg14[%c0_59, %c0_60, %c0_61] : memref<1x16x128xf32, #tpu.memory_space<vmem>>, vector<1x16x128xf32>
    %61 = vector.shape_cast %60 : vector<1x16x128xf32> to vector<16x128xf32>
    %62 = vector.shape_cast %59 : vector<16x128xf32> to vector<1x16x128xf32>
    tpu.vector_store %arg14[%c0_59, %c0_60, %c0_61], %62 {strides = array<i32>} : memref<1x16x128xf32, #tpu.memory_space<vmem>>, vector<1x16x128xf32>,
    %c0_62 = arith.constant 0 : index
    %c0_63 = arith.constant 0 : index
    %63 = vector.load %arg11[%c0_62, %c0_63] : memref<16x16xbf16, #tpu.memory_space<vmem>>, vector<16x16xbf16>
    %64 = arith.truncf %59 : vector<16x128xf32> to vector<16x128xbf16>
    %cst_64 = arith.constant dense<0.000000e+00> : vector<16x128xf32>
    %65 = tpu.matmul %63, %64, %cst_64 {dimension_numbers = #tpu.dot_dimension_numbers<[1], [0], [0], [1], [0, 0, 1, 1], [], []>} : vector<16x16xbf16>, vector<16x128xbf16>, vector<16x128xf32> -> vector<16x128xf32>
    %c0_65 = arith.constant 0 : index
    %c0_66 = arith.constant 0 : index
    %66 = vector.load %arg12[%c0_65, %c0_66] : memref<16x1xf32, #tpu.memory_space<vmem>>, vector<16x1xf32>
    %67 = vector.broadcast %66 : vector<16x1xf32> to vector<16x128xf32>
    %68 = arith.addf %65, %67 : vector<16x128xf32>
    %c0_67 = arith.constant 0 : index
    %c0_68 = arith.constant 0 : index
    %c0_69 = arith.constant 0 : index
    %69 = vector.load %arg13[%c0_67, %c0_68, %c0_69] : memref<1x16x128xf32, #tpu.memory_space<vmem>>, vector<1x16x128xf32>
    %70 = vector.shape_cast %69 : vector<1x16x128xf32> to vector<16x128xf32>
    %71 = vector.shape_cast %68 : vector<16x128xf32> to vector<1x16x128xf32>
    tpu.vector_store %arg13[%c0_67, %c0_68, %c0_69], %71 {strides = array<i32>} : memref<1x16x128xf32, #tpu.memory_space<vmem>>, vector<1x16x128xf32>,
    return
  }
  func.func @transform_0(%arg0: i32, %arg1: i32) -> (i32, i32, i32, i32) {
    %c0_i32 = arith.constant 0 : i32
    %c0_i32_0 = arith.constant 0 : i32
    %c0_i32_1 = arith.constant 0 : i32
    return %arg1, %arg0, %c0_i32, %c0_i32_0 : i32, i32, i32, i32
  }
  func.func @transform_1(%arg0: i32, %arg1: i32) -> (i32, i32) {
    %c0_i32 = arith.constant 0 : i32
    %c0_i32_0 = arith.constant 0 : i32
    %c0_i32_1 = arith.constant 0 : i32
    return %c0_i32, %c0_i32_0 : i32, i32
  }
  func.func @transform_2(%arg0: i32, %arg1: i32) -> (i32, i32) {
    %c0_i32 = arith.constant 0 : i32
    %c0_i32_0 = arith.constant 0 : i32
    %c0_i32_1 = arith.constant 0 : i32
    return %c0_i32, %c0_i32_0 : i32, i32
  }
  func.func @transform_3(%arg0: i32, %arg1: i32) -> (i32, i32, i32) {
    %c0_i32 = arith.constant 0 : i32
    %c0_i32_0 = arith.constant 0 : i32
    %c0_i32_1 = arith.constant 0 : i32
    %c0_i32_2 = arith.constant 0 : i32
    return %c0_i32, %c0_i32_0, %c0_i32_1 : i32, i32, i32
  }
  func.func @transform_4(%arg0: i32, %arg1: i32) -> (i32, i32) {
    %c0_i32 = arith.constant 0 : i32
    %c0_i32_0 = arith.constant 0 : i32
    %c0_i32_1 = arith.constant 0 : i32
    return %c0_i32, %c0_i32_0 : i32, i32
  }
  func.func @transform_5(%arg0: i32, %arg1: i32) -> (i32, i32, i32) {
    %c0_i32 = arith.constant 0 : i32
    %c0_i32_0 = arith.constant 0 : i32
    %c0_i32_1 = arith.constant 0 : i32
    %c0_i32_2 = arith.constant 0 : i32
    return %c0_i32, %c0_i32_0, %c0_i32_1 : i32, i32, i32
  }
  func.func @transform_6(%arg0: i32, %arg1: i32) -> (i32, i32) {
    %c0_i32 = arith.constant 0 : i32
    %c0_i32_0 = arith.constant 0 : i32
    %c0_i32_1 = arith.constant 0 : i32
    return %c0_i32, %c0_i32_0 : i32, i32
  }
  func.func @transform_7(%arg0: i32, %arg1: i32) -> (i32, i32, i32) {
    %c0_i32 = arith.constant 0 : i32
    %c0_i32_0 = arith.constant 0 : i32
    %c0_i32_1 = arith.constant 0 : i32
    %c0_i32_2 = arith.constant 0 : i32
    return %c0_i32, %c0_i32_0, %c0_i32_1 : i32, i32, i32
  }
  func.func @transform_8(%arg0: i32, %arg1: i32) -> (i32, i32) {
    %c0_i32 = arith.constant 0 : i32
    %c0_i32_0 = arith.constant 0 : i32
    %c0_i32_1 = arith.constant 0 : i32
    return %c0_i32, %c0_i32_0 : i32, i32
  }
  func.func @transform_9(%arg0: i32, %arg1: i32) -> (i32, i32) {
    %c0_i32 = arith.constant 0 : i32
    %c0_i32_0 = arith.constant 0 : i32
    %c0_i32_1 = arith.constant 0 : i32
    return %c0_i32, %c0_i32_0 : i32, i32
  }
  func.func @transform_10(%arg0: i32, %arg1: i32) -> (i32, i32) {
    %c0_i32 = arith.constant 0 : i32
    %c0_i32_0 = arith.constant 0 : i32
    %c0_i32_1 = arith.constant 0 : i32
    return %c0_i32, %c0_i32_0 : i32, i32
  }
  func.func @transform_11(%arg0: i32, %arg1: i32) -> (i32, i32, i32) {
    %c0_i32 = arith.constant 0 : i32
    %c0_i32_0 = arith.constant 0 : i32
    return %arg1, %c0_i32, %arg0 : i32, i32, i32
  }
  func.func @transform_12(%arg0: i32, %arg1: i32) -> (i32, i32, i32) {
    %c0_i32 = arith.constant 0 : i32
    %c0_i32_0 = arith.constant 0 : i32
    return %arg1, %c0_i32, %arg0 : i32, i32, i32
  }
}

</mosaic_0001>

<llo_original>
// kernel: tpu_custom_call.1
$region0: #{tpu_custom_call.1}
  #allocation0 [shape = 'u32[]', space=smem, size = 0x4, offset = 0x4, fixed_abs, tag = 'smem constant byte address 0x4 - core index']
  #allocation1 [shape = 'u32[72,128]{1,0:T(1,128)}', space=vmem, size = 0x9000, scoped, tag = 'internal scratch']
  #allocation2 [shape = 'f32[16,384]{1,0:T(8,128)}', space=vmem, size = 0x6000, scoped, tag = 'scratch operand']
  #allocation3 [shape = 'f32[16,384]{1,0:T(8,128)}', space=vmem, size = 0x6000, scoped, tag = 'scratch operand']
  %s0 = inlined_call_operand.vmem [shape: bf16[2,1,16,256], index: 0, kind: input, shape index: {}]
  %s1 = inlined_call_operand.hbm [shape: bf16[16,16], index: 1, kind: input, shape index: {}]
  %s2 = inlined_call_operand.vmem [shape: f32[16,1], index: 2, kind: input, shape index: {}]
  %s3 = inlined_call_operand.vmem [shape: bf16[2,16,16], index: 3, kind: input, shape index: {}]
  %s4 = inlined_call_operand.vmem [shape: f32[16,1], index: 4, kind: input, shape index: {}]
  %s5 = inlined_call_operand.vmem [shape: bf16[2,16,16], index: 5, kind: input, shape index: {}]
  %s6 = inlined_call_operand.vmem [shape: f32[16,1], index: 6, kind: input, shape index: {}]
  %s7 = inlined_call_operand.vmem [shape: bf16[2,16,16], index: 7, kind: input, shape index: {}]
  %s8 = inlined_call_operand.vmem [shape: f32[16,1], index: 8, kind: input, shape index: {}]
  %s9 = inlined_call_operand.vmem [shape: bf16[16,16], index: 9, kind: input, shape index: {}]
  %s10 = inlined_call_operand.vmem [shape: f32[16,1], index: 10, kind: input, shape index: {}]
  %s11 = inlined_call_operand.hbm [shape: f32[2,16,128], index: 11, kind: output, shape index: {0}]
  %s12 = inlined_call_operand.hbm [shape: f32[2,16,128], index: 12, kind: output, shape index: {1}]
  %13 = xla_tuple %s11, %s12
  %s14 = sld [smem:[#allocation0]]
  $region89: #{tpu_custom_call.1} parent=0
    _
  %s16 = ssub.s32 1, %s14
  %s17 = scalar_select 0, %s16, %s14
  $region1: #{tpu_custom_call.1} parent=0
    #allocation4 [shape = 'u8[4096]{0}', space=vmem, size = 0x1000, scoped, tag = 'input window, operand 1, single buffered']
    #allocation5 [shape = 's32[2]{0}', space=sflag, size = 0x8, scoped, tag = 'scoped memory for tpu_custom_call.1']
    #allocation6 [shape = 's32[2]{0}', space=sflag, size = 0x8, scoped, tag = 'scoped memory for tpu_custom_call.1']
    #allocation7 [shape = 'u8[16384]{0}', space=vmem, size = 0x4000, scoped, tag = 'output window, operand 0']
    #allocation8 [shape = 'u8[16384]{0}', space=vmem, size = 0x4000, scoped, tag = 'output window, operand 1']
    #allocation9 [shape = 's32[2]{0}', space=sflag, size = 0x8, scoped, tag = 'scoped memory for tpu_custom_call.1']
    %18 = vsyncpa [#allocation5], 0
    %19 = vsyncpa [#allocation6], 0
    %s20 = scalar_lea.sflag [#allocation6], 1
    %21 = vsyncpa %s20, 0
    %22 = vsyncpa [#allocation9], 0
    %s23 = scalar_lea.sflag [#allocation9], 1
    %24 = vsyncpa %s23, 0
    loop: start=0, step=1, limit=4
    $region2: #{tpu_custom_call.1} parent=1 // loop_pre_header
      _
    $region3: #{tpu_custom_call.1} parent=1 // loop_header
      %s26 = sphi 0, %s30
      %p27 = scmp.ge.s32.totalorder %s26, 4
      %s33 = sphi 0, %s45
      %s34 = sphi 0, %s41
      %s35 = sphi 0, %s33
      %s36 = sphi 0, %s34
      %s37 = sphi 0, %s35
      %s38 = sphi 0, %s36
      %s50 = sphi 0, %s52
      %s53 = sphi 0, %s50
      %s54 = sphi 0, %s53
      %s70 = sphi 0, %s54
      %s74 = sphi 0, %s74
      %s76 = sphi 0, %s74
      %s77 = sphi 0, %s76
      %s91 = sphi 0, %s77
      %s95 = sphi 0, %s95
      %s97 = sphi 0, %s95
      %s98 = sphi 0, %s97
      %s112 = sphi 0, %s98
      %s116 = sphi 0, %s116
      %s118 = sphi 0, %s116
      %s119 = sphi 0, %s118
      %s133 = sphi 0, %s119
      %s137 = sphi 0, %s137
      %s139 = sphi 0, %s137
      %s140 = sphi 0, %s139
      %s154 = sphi 0, %s140
      %s158 = sphi 0, %s158
      %s160 = sphi 0, %s158
      %s161 = sphi 0, %s160
      %s175 = sphi 0, %s161
      %s179 = sphi 0, %s179
      %s181 = sphi 0, %s179
      %s182 = sphi 0, %s181
      %s196 = sphi 0, %s182
      %s200 = sphi 0, %s200
      %s202 = sphi 0, %s200
      %s203 = sphi 0, %s202
      %s217 = sphi 0, %s203
      %s221 = sphi 0, %s221
      %s223 = sphi 0, %s221
      %s224 = sphi 0, %s223
      %s238 = sphi 0, %s224
      %s242 = sphi 0, %s242
      %s244 = sphi 0, %s242
      %s245 = sphi 0, %s244
      %s259 = sphi 0, %s245
      %s263 = sphi 0, %s263
      %s265 = sphi 0, %s263
      %s266 = sphi 0, %s265
      %s280 = sphi 0, %s266
      %s288 = sphi 0, %s290
      %s291 = sphi 0, %s288
      %s292 = sphi 0, %s291
      %s308 = sphi 0, %s292
      %s316 = sphi 0, %s318
      %s319 = sphi 0, %s316
      %s320 = sphi 0, %s319
      %s336 = sphi 0, %s320
    $region4: #{tpu_custom_call.1} parent=1 // loop_header_branch
      %29 = sbr.rel (%p27) target = $region8
    $region5: #{tpu_custom_call.1} parent=1 // loop_body
      %s31 = ssub.s32 %s26, 1
      %s32 = ssub.s32 %s26, 2
      %s39 = sadd.s32 1, %s34
      %p40 = scmp.ge.s32.totalorder %s39, 2
      %s41 = scalar_select %p40, 0, %s39
      %s42 = sadd.s32 1, %s33
      %s43 = scalar_select %p40, %s42, %s33
      %p44 = scmp.ge.s32.totalorder %s43, 1
      %s45 = scalar_select %p44, 0, %s43
      %s46 = ssub.s32 %s34, %s41
      %s47 = ssub.s32 %s33, %s45
      %s48 = sor.u32 %s46, %s47
      %p49 = scmp.eq.s32.totalorder %s48, 0
      %s51 = sadd.s32 %s50, 1
      %s52 = scalar_select %p49, %s50, %s51
      %p55 = pneg %p49
      %p56 = scmp.eq.s32.totalorder %s26, 1
      %p57 = por %p55, %p56
      %p58 = scmp.ne.s32.totalorder %s50, %s53
      %p59 = scmp.eq.s32.totalorder %s26, 0
      %p60 = por %p58, %p59
      %p61 = scmp.ne.s32.totalorder %s50, %s53
      %p62 = scmp.eq.s32.totalorder %s31, 1
      %p63 = por %p61, %p62
      %p64 = scmp.ne.s32.totalorder %s53, %s54
      %p65 = scmp.eq.s32.totalorder %s31, 0
      %p66 = por %p64, %p65
      %p67 = scmp.ne.s32.totalorder %s53, %s54
      %p68 = scmp.eq.s32.totalorder %s32, 1
      %p69 = por %p67, %p68
      %p71 = scmp.ne.s32.totalorder %s54, %s70
      %p72 = scmp.eq.s32.totalorder %s32, 0
      %p73 = por %p71, %p72
      %s75 = sadd.s32 %s74, 1
      %p78 = scmp.eq.s32.totalorder %s26, 1
      %p79 = scmp.ne.s32.totalorder %s74, %s76
      %p80 = scmp.eq.s32.totalorder %s26, 0
      %p81 = por %p79, %p80
      %p82 = scmp.ne.s32.totalorder %s74, %s76
      %p83 = scmp.eq.s32.totalorder %s31, 1
      %p84 = por %p82, %p83
      %p85 = scmp.ne.s32.totalorder %s76, %s77
      %p86 = scmp.eq.s32.totalorder %s31, 0
      %p87 = por %p85, %p86
      %p88 = scmp.ne.s32.totalorder %s76, %s77
      %p89 = scmp.eq.s32.totalorder %s32, 1
      %p90 = por %p88, %p89
      %p92 = scmp.ne.s32.totalorder %s77, %s91
      %p93 = scmp.eq.s32.totalorder %s32, 0
      %p94 = por %p92, %p93
      %s96 = sadd.s32 %s95, 1
      %p99 = scmp.eq.s32.totalorder %s26, 1
      %p100 = scmp.ne.s32.totalorder %s95, %s97
      %p101 = scmp.eq.s32.totalorder %s26, 0
      %p102 = por %p100, %p101
      %p103 = scmp.ne.s32.totalorder %s95, %s97
      %p104 = scmp.eq.s32.totalorder %s31, 1
      %p105 = por %p103, %p104
      %p106 = scmp.ne.s32.totalorder %s97, %s98
      %p107 = scmp.eq.s32.totalorder %s31, 0
      %p108 = por %p106, %p107
      %p109 = scmp.ne.s32.totalorder %s97, %s98
      %p110 = scmp.eq.s32.totalorder %s32, 1
      %p111 = por %p109, %p110
      %p113 = scmp.ne.s32.totalorder %s98, %s112
      %p114 = scmp.eq.s32.totalorder %s32, 0
      %p115 = por %p113, %p114
      %s117 = sadd.s32 %s116, 1
      %p120 = scmp.eq.s32.totalorder %s26, 1
      %p121 = scmp.ne.s32.totalorder %s116, %s118
      %p122 = scmp.eq.s32.totalorder %s26, 0
      %p123 = por %p121, %p122
      %p124 = scmp.ne.s32.totalorder %s116, %s118
      %p125 = scmp.eq.s32.totalorder %s31, 1
      %p126 = por %p124, %p125
      %p127 = scmp.ne.s32.totalorder %s118, %s119
      %p128 = scmp.eq.s32.totalorder %s31, 0
      %p129 = por %p127, %p128
      %p130 = scmp.ne.s32.totalorder %s118, %s119
      %p131 = scmp.eq.s32.totalorder %s32, 1
      %p132 = por %p130, %p131
      %p134 = scmp.ne.s32.totalorder %s119, %s133
      %p135 = scmp.eq.s32.totalorder %s32, 0
      %p136 = por %p134, %p135
      %s138 = sadd.s32 %s137, 1
      %p141 = scmp.eq.s32.totalorder %s26, 1
      %p142 = scmp.ne.s32.totalorder %s137, %s139
      %p143 = scmp.eq.s32.totalorder %s26, 0
      %p144 = por %p142, %p143
      %p145 = scmp.ne.s32.totalorder %s137, %s139
      %p146 = scmp.eq.s32.totalorder %s31, 1
      %p147 = por %p145, %p146
      %p148 = scmp.ne.s32.totalorder %s139, %s140
      %p149 = scmp.eq.s32.totalorder %s31, 0
      %p150 = por %p148, %p149
      %p151 = scmp.ne.s32.totalorder %s139, %s140
      %p152 = scmp.eq.s32.totalorder %s32, 1
      %p153 = por %p151, %p152
      %p155 = scmp.ne.s32.totalorder %s140, %s154
      %p156 = scmp.eq.s32.totalorder %s32, 0
      %p157 = por %p155, %p156
      %s159 = sadd.s32 %s158, 1
      %p162 = scmp.eq.s32.totalorder %s26, 1
      %p163 = scmp.ne.s32.totalorder %s158, %s160
      %p164 = scmp.eq.s32.totalorder %s26, 0
      %p165 = por %p163, %p164
      %p166 = scmp.ne.s32.totalorder %s158, %s160
      %p167 = scmp.eq.s32.totalorder %s31, 1
      %p168 = por %p166, %p167
      %p169 = scmp.ne.s32.totalorder %s160, %s161
      %p170 = scmp.eq.s32.totalorder %s31, 0
      %p171 = por %p169, %p170
      %p172 = scmp.ne.s32.totalorder %s160, %s161
      %p173 = scmp.eq.s32.totalorder %s32, 1
      %p174 = por %p172, %p173
      %p176 = scmp.ne.s32.totalorder %s161, %s175
      %p177 = scmp.eq.s32.totalorder %s32, 0
      %p178 = por %p176, %p177
      %s180 = sadd.s32 %s179, 1
      %p183 = scmp.eq.s32.totalorder %s26, 1
      %p184 = scmp.ne.s32.totalorder %s179, %s181
      %p185 = scmp.eq.s32.totalorder %s26, 0
      %p186 = por %p184, %p185
      %p187 = scmp.ne.s32.totalorder %s179, %s181
      %p188 = scmp.eq.s32.totalorder %s31, 1
      %p189 = por %p187, %p188
      %p190 = scmp.ne.s32.totalorder %s181, %s182
      %p191 = scmp.eq.s32.totalorder %s31, 0
      %p192 = por %p190, %p191
      %p193 = scmp.ne.s32.totalorder %s181, %s182
      %p194 = scmp.eq.s32.totalorder %s32, 1
      %p195 = por %p193, %p194
      %p197 = scmp.ne.s32.totalorder %s182, %s196
      %p198 = scmp.eq.s32.totalorder %s32, 0
      %p199 = por %p197, %p198
      %s201 = sadd.s32 %s200, 1
      %p204 = scmp.eq.s32.totalorder %s26, 1
      %p205 = scmp.ne.s32.totalorder %s200, %s202
      %p206 = scmp.eq.s32.totalorder %s26, 0
      %p207 = por %p205, %p206
      %p208 = scmp.ne.s32.totalorder %s200, %s202
      %p209 = scmp.eq.s32.totalorder %s31, 1
      %p210 = por %p208, %p209
      %p211 = scmp.ne.s32.totalorder %s202, %s203
      %p212 = scmp.eq.s32.totalorder %s31, 0
      %p213 = por %p211, %p212
      %p214 = scmp.ne.s32.totalorder %s202, %s203
      %p215 = scmp.eq.s32.totalorder %s32, 1
      %p216 = por %p214, %p215
      %p218 = scmp.ne.s32.totalorder %s203, %s217
      %p219 = scmp.eq.s32.totalorder %s32, 0
      %p220 = por %p218, %p219
      %s222 = sadd.s32 %s221, 1
      %p225 = scmp.eq.s32.totalorder %s26, 1
      %p226 = scmp.ne.s32.totalorder %s221, %s223
      %p227 = scmp.eq.s32.totalorder %s26, 0
      %p228 = por %p226, %p227
      %p229 = scmp.ne.s32.totalorder %s221, %s223
      %p230 = scmp.eq.s32.totalorder %s31, 1
      %p231 = por %p229, %p230
      %p232 = scmp.ne.s32.totalorder %s223, %s224
      %p233 = scmp.eq.s32.totalorder %s31, 0
      %p234 = por %p232, %p233
      %p235 = scmp.ne.s32.totalorder %s223, %s224
      %p236 = scmp.eq.s32.totalorder %s32, 1
      %p237 = por %p235, %p236
      %p239 = scmp.ne.s32.totalorder %s224, %s238
      %p240 = scmp.eq.s32.totalorder %s32, 0
      %p241 = por %p239, %p240
      %s243 = sadd.s32 %s242, 1
      %p246 = scmp.eq.s32.totalorder %s26, 1
      %p247 = scmp.ne.s32.totalorder %s242, %s244
      %p248 = scmp.eq.s32.totalorder %s26, 0
      %p249 = por %p247, %p248
      %p250 = scmp.ne.s32.totalorder %s242, %s244
      %p251 = scmp.eq.s32.totalorder %s31, 1
      %p252 = por %p250, %p251
      %p253 = scmp.ne.s32.totalorder %s244, %s245
      %p254 = scmp.eq.s32.totalorder %s31, 0
      %p255 = por %p253, %p254
      %p256 = scmp.ne.s32.totalorder %s244, %s245
      %p257 = scmp.eq.s32.totalorder %s32, 1
      %p258 = por %p256, %p257
      %p260 = scmp.ne.s32.totalorder %s245, %s259
      %p261 = scmp.eq.s32.totalorder %s32, 0
      %p262 = por %p260, %p261
      %s264 = sadd.s32 %s263, 1
      %p267 = scmp.eq.s32.totalorder %s26, 1
      %p268 = scmp.ne.s32.totalorder %s263, %s265
      %p269 = scmp.eq.s32.totalorder %s26, 0
      %p270 = por %p268, %p269
      %p271 = scmp.ne.s32.totalorder %s263, %s265
      %p272 = scmp.eq.s32.totalorder %s31, 1
      %p273 = por %p271, %p272
      %p274 = scmp.ne.s32.totalorder %s265, %s266
      %p275 = scmp.eq.s32.totalorder %s31, 0
      %p276 = por %p274, %p275
      %p277 = scmp.ne.s32.totalorder %s265, %s266
      %p278 = scmp.eq.s32.totalorder %s32, 1
      %p279 = por %p277, %p278
      %p281 = scmp.ne.s32.totalorder %s266, %s280
      %p282 = scmp.eq.s32.totalorder %s32, 0
      %p283 = por %p281, %p282
      %s284 = ssub.s32 %s34, %s41
      %s285 = ssub.s32 %s33, %s45
      %s286 = sor.u32 %s284, %s285
      %p287 = scmp.eq.s32.totalorder %s286, 0
      %s289 = sadd.s32 %s288, 1
      %s290 = scalar_select %p287, %s288, %s289
      %p293 = pneg %p287
      %p294 = scmp.eq.s32.totalorder %s26, 1
      %p295 = por %p293, %p294
      %p296 = scmp.ne.s32.totalorder %s288, %s291
      %p297 = scmp.eq.s32.totalorder %s26, 0
      %p298 = por %p296, %p297
      %p299 = scmp.ne.s32.totalorder %s288, %s291
      %p300 = scmp.eq.s32.totalorder %s31, 1
      %p301 = por %p299, %p300
      %p302 = scmp.ne.s32.totalorder %s291, %s292
      %p303 = scmp.eq.s32.totalorder %s31, 0
      %p304 = por %p302, %p303
      %p305 = scmp.ne.s32.totalorder %s291, %s292
      %p306 = scmp.eq.s32.totalorder %s32, 1
      %p307 = por %p305, %p306
      %p309 = scmp.ne.s32.totalorder %s292, %s308
      %p310 = scmp.eq.s32.totalorder %s32, 0
      %p311 = por %p309, %p310
      %s312 = ssub.s32 %s34, %s41
      %s313 = ssub.s32 %s33, %s45
      %s314 = sor.u32 %s312, %s313
      %p315 = scmp.eq.s32.totalorder %s314, 0
      %s317 = sadd.s32 %s316, 1
      %s318 = scalar_select %p315, %s316, %s317
      %p321 = pneg %p315
      %p322 = scmp.eq.s32.totalorder %s26, 1
      %p323 = por %p321, %p322
      %p324 = scmp.ne.s32.totalorder %s316, %s319
      %p325 = scmp.eq.s32.totalorder %s26, 0
      %p326 = por %p324, %p325
      %p327 = scmp.ne.s32.totalorder %s316, %s319
      %p328 = scmp.eq.s32.totalorder %s31, 1
      %p329 = por %p327, %p328
      %p330 = scmp.ne.s32.totalorder %s319, %s320
      %p331 = scmp.eq.s32.totalorder %s31, 0
      %p332 = por %p330, %p331
      %p333 = scmp.ne.s32.totalorder %s319, %s320
      %p334 = scmp.eq.s32.totalorder %s32, 1
      %p335 = por %p333, %p334
      %p337 = scmp.ne.s32.totalorder %s320, %s336
      %p338 = scmp.eq.s32.totalorder %s32, 0
      %p339 = por %p337, %p338
      %p340 = scmp.le.s32.totalorder 1, %s26
      %p341 = scmp.lt.s32.totalorder %s26, 3
      %p342 = pnand %p340, %p341
      %p343 = pneg %p342
      // Predicated region
      $region9: #{tpu_custom_call.1} parent=5 // pred_check
        _
      $region10: #{tpu_custom_call.1} parent=5 // pred_check_branch
        %345 = sbr.rel (%p342) target = $region12
      $region11: #{tpu_custom_call.1} parent=5 // pred_region
        %s346 = ssub.s32 %s26, 1
        // Predicated region
        $region13: #{tpu_custom_call.1} parent=11 // pred_check
          %p347 = pneg %p87
        $region14: #{tpu_custom_call.1} parent=11 // pred_check_branch
          %349 = sbr.rel (%p347) target = $region16
        $region15: #{tpu_custom_call.1} parent=11 // pred_region
          %351 = vsyncadd [#allocation5], 0
          %s352 = sshll.u32 %s1, 4
          %s353 = int_to_ptr.hbm [resolvable:$true] %s352
          %s354 = sshll.u32 [#allocation4], 4
          %s355 = int_to_ptr.vmem [resolvable:$true] %s354
          %360 = dma.hbm_to_vmem [thread:$0]  %s353, 128, %s355, [#allocation5], 64, 64, 4
        $region16: #{tpu_custom_call.1} parent=11 // pred_fallthru
          _
        // Predicated region
        $region17: #{tpu_custom_call.1} parent=11 // pred_check
          %p361 = pneg %p108
        $region18: #{tpu_custom_call.1} parent=11 // pred_check_branch
          %363 = sbr.rel (%p361) target = $region20
        $region19: #{tpu_custom_call.1} parent=11 // pred_region
          _
        $region20: #{tpu_custom_call.1} parent=11 // pred_fallthru
          _
        // Predicated region
        $region21: #{tpu_custom_call.1} parent=11 // pred_check
          %p364 = pneg %p129
        $region22: #{tpu_custom_call.1} parent=11 // pred_check_branch
          %366 = sbr.rel (%p364) target = $region24
        $region23: #{tpu_custom_call.1} parent=11 // pred_region
          _
        $region24: #{tpu_custom_call.1} parent=11 // pred_fallthru
          _
        // Predicated region
        $region25: #{tpu_custom_call.1} parent=11 // pred_check
          %p367 = pneg %p150
        $region26: #{tpu_custom_call.1} parent=11 // pred_check_branch
          %369 = sbr.rel (%p367) target = $region28
        $region27: #{tpu_custom_call.1} parent=11 // pred_region
          _
        $region28: #{tpu_custom_call.1} parent=11 // pred_fallthru
          _
        // Predicated region
        $region29: #{tpu_custom_call.1} parent=11 // pred_check
          %p370 = pneg %p171
        $region30: #{tpu_custom_call.1} parent=11 // pred_check_branch
          %372 = sbr.rel (%p370) target = $region32
        $region31: #{tpu_custom_call.1} parent=11 // pred_region
          _
        $region32: #{tpu_custom_call.1} parent=11 // pred_fallthru
          _
        // Predicated region
        $region33: #{tpu_custom_call.1} parent=11 // pred_check
          %p373 = pneg %p192
        $region34: #{tpu_custom_call.1} parent=11 // pred_check_branch
          %375 = sbr.rel (%p373) target = $region36
        $region35: #{tpu_custom_call.1} parent=11 // pred_region
          _
        $region36: #{tpu_custom_call.1} parent=11 // pred_fallthru
          _
        // Predicated region
        $region37: #{tpu_custom_call.1} parent=11 // pred_check
          %p376 = pneg %p213
        $region38: #{tpu_custom_call.1} parent=11 // pred_check_branch
          %378 = sbr.rel (%p376) target = $region40
        $region39: #{tpu_custom_call.1} parent=11 // pred_region
          _
        $region40: #{tpu_custom_call.1} parent=11 // pred_fallthru
          _
        // Predicated region
        $region41: #{tpu_custom_call.1} parent=11 // pred_check
          %p379 = pneg %p234
        $region42: #{tpu_custom_call.1} parent=11 // pred_check_branch
          %381 = sbr.rel (%p379) target = $region44
        $region43: #{tpu_custom_call.1} parent=11 // pred_region
          _
        $region44: #{tpu_custom_call.1} parent=11 // pred_fallthru
          _
        // Predicated region
        $region45: #{tpu_custom_call.1} parent=11 // pred_check
          %p382 = pneg %p255
        $region46: #{tpu_custom_call.1} parent=11 // pred_check_branch
          %384 = sbr.rel (%p382) target = $region48
        $region47: #{tpu_custom_call.1} parent=11 // pred_region
          _
        $region48: #{tpu_custom_call.1} parent=11 // pred_fallthru
          _
        // Predicated region
        $region49: #{tpu_custom_call.1} parent=11 // pred_check
          %p385 = pneg %p276
        $region50: #{tpu_custom_call.1} parent=11 // pred_check_branch
          %387 = sbr.rel (%p385) target = $region52
        $region51: #{tpu_custom_call.1} parent=11 // pred_region
          _
        $region52: #{tpu_custom_call.1} parent=11 // pred_fallthru
          _
      $region12: #{tpu_custom_call.1} parent=5 // pred_fallthru
        _
      %p388 = scmp.lt.s32.totalorder %s26, 2
      // Predicated region
      $region53: #{tpu_custom_call.1} parent=5 // pred_check
        %p389 = pneg %p388
      $region54: #{tpu_custom_call.1} parent=5 // pred_check_branch
        %391 = sbr.rel (%p389) target = $region56
      $region55: #{tpu_custom_call.1} parent=5 // pred_region
        // Predicated region
        $region57: #{tpu_custom_call.1} parent=55 // pred_check
          %p392 = pneg %p60
        $region58: #{tpu_custom_call.1} parent=55 // pred_check_branch
          %394 = sbr.rel (%p392) target = $region60
        $region59: #{tpu_custom_call.1} parent=55 // pred_region
          %p395 = scmp.lt.s32.totalorder %s34, 1
          %s396 = scalar_select %p395, %s34, 1
          %p397 = scmp.lt.s32.totalorder %s33, 0
          %s398 = scalar_select %p397, %s33, 0
          %s399 = smul.addr %s398, 4
          %s400 = smul.addr %s396, 4
          %s401 = sadd.s32 %s399, %s400
          %s402 = smul.addr %s401, 4
          %s403 = scalar_lea.vmem %s0, %s402
        $region60: #{tpu_custom_call.1} parent=55 // pred_fallthru
          _
      $region56: #{tpu_custom_call.1} parent=5 // pred_fallthru
        _
      %p404 = scmp.le.s32.totalorder 1, %s26
      %p405 = scmp.lt.s32.totalorder %s26, 3
      %p406 = pnand %p404, %p405
      %p407 = pneg %p406
      // Predicated region
      $region61: #{tpu_custom_call.1} parent=5 // pred_check
        _
      $region62: #{tpu_custom_call.1} parent=5 // pred_check_branch
        %409 = sbr.rel (%p406) target = $region64
      $region63: #{tpu_custom_call.1} parent=5 // pred_region
        %s410 = ssub.s32 %s26, 1
        // Predicated region
        $region65: #{tpu_custom_call.1} parent=63 // pred_check
          %p411 = pneg %p87
        $region66: #{tpu_custom_call.1} parent=63 // pred_check_branch
          %413 = sbr.rel (%p411) target = $region68
        $region67: #{tpu_custom_call.1} parent=63 // pred_region
          %415 = dma.done [#allocation5], 128
        $region68: #{tpu_custom_call.1} parent=63 // pred_fallthru
          _
        %p416 = scmp.lt.s32.totalorder %s36, 1
        %s417 = scalar_select %p416, %s36, 1
        %p418 = scmp.lt.s32.totalorder %s35, 0
        %s419 = scalar_select %p418, %s35, 0
        %s420 = smul.addr %s419, 4
        %s421 = smul.addr %s417, 4
        %s422 = sadd.s32 %s420, %s421
        %s423 = smul.addr %s422, 4
        %s424 = scalar_lea.vmem %s0, %s423
        %p425 = pneg %p66
        %p426 = pneg %p63
        %p427 = pneg %p87
        %p428 = pneg %p84
        %p429 = pneg %p108
        %p430 = pneg %p105
        %p431 = pneg %p129
        %p432 = pneg %p126
        %p433 = pneg %p150
        %p434 = pneg %p147
        %p435 = pneg %p171
        %p436 = pneg %p168
        %p437 = pneg %p192
        %p438 = pneg %p189
        %p439 = pneg %p213
        %p440 = pneg %p210
        %p441 = pneg %p234
        %p442 = pneg %p231
        %p443 = pneg %p255
        %p444 = pneg %p252
        %p445 = pneg %p276
        %p446 = pneg %p273
        %p447 = pneg %p304
        %p448 = pneg %p301
        %s449 = sand.u32 %s291, 1
        %s450 = scalar_lea.sflag [#allocation6], %s449
        %s451 = sand.u32 %s291, 1
        %s452 = smul.addr %s451, 16
        %s453 = scalar_lea.vmem [#allocation7], %s452
        %p454 = pneg %p332
        %p455 = pneg %p329
        %s456 = sand.u32 %s319, 1
        %s457 = scalar_lea.sflag [#allocation9], %s456
        %s458 = sand.u32 %s319, 1
        %s459 = smul.addr %s458, 16
        %s460 = scalar_lea.vmem [#allocation8], %s459
        %p461 = scmp.lt.s32.totalorder %s36, 1
        %s462 = scalar_select %p461, %s36, 1
        %p463 = scmp.lt.s32.totalorder %s35, 0
        %s464 = scalar_select %p463, %s35, 0
        %s465 = smul.addr %s464, 4
        %s466 = smul.addr %s462, 4
        %s467 = sadd.s32 %s465, %s466
        %s468 = smul.addr %s467, 4
        %s469 = scalar_lea.vmem %s0, %s468
        %v471 = vld [vmem:[%s469] sm:$0xff]
        %v472 = vld [vmem:[%s469 + $0x8] sm:$0xff]
        %v473 = vld [vmem:[#allocation4] sm:$0xf]
        %v474 = vld [vmem:[#allocation4 + $0x4] sm:$0xf]
        %v475 = vld [vmem:[%s2] sm:$0xff]
        %v476 = vld [vmem:[%s2 + $0x8] sm:$0xff]
        %478 = vset.pattern.permute.xlu0 0
        %479 = vperm.xlu0 %478, %v475
        %v480 = vpop.permute.xlu0 %479
        %483 = vset.pattern.permute.xlu0 0
        %484 = vperm.xlu0 %483, %v476
        %v485 = vpop.permute.xlu0 %484
        %v489 = vunpack.c.l.b16 %v473
        %v490 = vunpack.c.l.b16 %v474
        %v491 = vpack.c.b16 %v490, %v489
        %v494 = vunpack.c.l.b16 %v471
        %v495 = vunpack.c.h.b16 %v471
        %v496 = vunpack.c.l.b16 %v472
        %v497 = vunpack.c.h.b16 %v472
        %v498 = vpack.c.b16 %v496, %v494
        %v499 = vpack.c.b16 %v497, %v495
        %vm502 = vcmask 130048
        %v504 = vsel %vm502, %v491, 0
        %506 = vmatpush.bf16.msra.mxu0 0
        %507 = vmatpush.bf16.msra.mxu0 0
        %508 = vmatpush.bf16.msra.mxu0 0
        %509 = vmatpush.bf16.msra.mxu0 0
        %510 = vmatpush.bf16.msra.mxu0 0
        %511 = vmatpush.bf16.msra.mxu0 0
        %512 = vmatpush.bf16.msra.mxu0 0
        %513 = vmatpush.bf16.msra.mxu0 %v498
        %514 = vmatmul.bf16.gmra.mxu0 %v504
        %v515 = vpop.f32.mrf.mxu0
        %v516 = vadd.f32 %v480, %v515
        %v517 = vpop.f32.mrf.mxu0
        %v518 = vadd.f32 %v485, %v517
        %519 = vdwg.mxu0
        %520 = vmatpush.bf16.msra.mxu0 0
        %521 = vmatpush.bf16.msra.mxu0 0
        %522 = vmatpush.bf16.msra.mxu0 0
        %523 = vmatpush.bf16.msra.mxu0 0
        %524 = vmatpush.bf16.msra.mxu0 0
        %525 = vmatpush.bf16.msra.mxu0 0
        %526 = vmatpush.bf16.msra.mxu0 0
        %527 = vmatpush.bf16.msra.mxu0 %v499
        %528 = vmatmul.bf16.gmra.mxu0 %v504
        %v529 = vpop.f32.mrf.mxu0
        %v530 = vadd.f32 %v480, %v529
        %v531 = vpop.f32.mrf.mxu0
        %v532 = vadd.f32 %v485, %v531
        %533 = vdwg.mxu0
        %534 = vst [vmem:[#allocation2] sm:$0xff] %v516
        %535 = vst [vmem:[#allocation2 + $0x8] sm:$0xff] %v530
        %536 = vst [vmem:[#allocation2 + $0x18] sm:$0xff] %v518
        %537 = vst [vmem:[#allocation2 + $0x20] sm:$0xff] %v532
        %v538 = vld [vmem:[#allocation2] sm:$0xff]
        %v539 = vld [vmem:[#allocation2 + $0x8] sm:$0xff]
        %v540 = vld [vmem:[#allocation2 + $0x18] sm:$0xff]
        %v541 = vld [vmem:[#allocation2 + $0x20] sm:$0xff]
        %v542 = vpack.c.bf16 %v540, %v538
        %v543 = vpack.c.bf16 %v541, %v539
        %v544 = vld [vmem:[%s3] sm:$0xf]
        %v545 = vld [vmem:[%s3 + $0x4] sm:$0xf]
        %v546 = vld [vmem:[#allocation2] sm:$0xff]
        %v547 = vld [vmem:[#allocation2 + $0x8] sm:$0xff]
        %v548 = vld [vmem:[#allocation2 + $0x10] sm:$0xff]
        %v549 = vld [vmem:[#allocation2 + $0x18] sm:$0xff]
        %v550 = vld [vmem:[#allocation2 + $0x20] sm:$0xff]
        %v551 = vld [vmem:[#allocation2 + $0x28] sm:$0xff]
        %v552 = vpack.c.bf16 %v549, %v546
        %v553 = vpack.c.bf16 %v550, %v547
        %v554 = vpack.c.bf16 %v551, %v548
        %s555 = scalar_lea.vmem %s3, 8
        %v556 = vld [vmem:[%s555] sm:$0xf]
        %v557 = vld [vmem:[%s555 + $0x4] sm:$0xf]
        %v560 = vunpack.c.l.b16 %v556
        %v561 = vunpack.c.l.b16 %v557
        %v562 = vpack.c.b16 %v561, %v560
        %566 = vrot.lane.b32.xlu0 %v552, 127
        %v567 = vpop.permute.xlu0 %566
        %568 = vrot.lane.b32.xlu0 %v553, 127
        %v569 = vpop.permute.xlu0 %568
        %570 = vrot.lane.b32.xlu0 %v554, 127
        %v571 = vpop.permute.xlu0 %570
        %vm572 = vcmask 1039360
        %v573 = vsel %vm572, %v567, %v569
        %v574 = vsel %vm572, %v569, %v571
        %v578 = vsel %vm502, %v562, 0
        %580 = vmatpush.bf16.msra.mxu0 0
        %581 = vmatpush.bf16.msra.mxu0 0
        %582 = vmatpush.bf16.msra.mxu0 0
        %583 = vmatpush.bf16.msra.mxu0 0
        %584 = vmatpush.bf16.msra.mxu0 0
        %585 = vmatpush.bf16.msra.mxu0 0
        %586 = vmatpush.bf16.msra.mxu0 0
        %587 = vmatpush.bf16.msra.mxu0 %v573
        %588 = vmatmul.bf16.gmra.mxu0 %v578
        %v589 = vpop.f32.mrf.mxu0
        %v590 = vadd.f32 0.0, %v589
        %v591 = vpop.f32.mrf.mxu0
        %v592 = vadd.f32 0.0, %v591
        %593 = vdwg.mxu0
        %594 = vmatpush.bf16.msra.mxu0 0
        %595 = vmatpush.bf16.msra.mxu0 0
        %596 = vmatpush.bf16.msra.mxu0 0
        %597 = vmatpush.bf16.msra.mxu0 0
        %598 = vmatpush.bf16.msra.mxu0 0
        %599 = vmatpush.bf16.msra.mxu0 0
        %600 = vmatpush.bf16.msra.mxu0 0
        %601 = vmatpush.bf16.msra.mxu0 %v574
        %602 = vmatmul.bf16.gmra.mxu0 %v578
        %v603 = vpop.f32.mrf.mxu0
        %v604 = vadd.f32 0.0, %v603
        %v605 = vpop.f32.mrf.mxu0
        %v606 = vadd.f32 0.0, %v605
        %607 = vdwg.mxu0
        %v610 = vunpack.c.l.b16 %v544
        %v611 = vunpack.c.l.b16 %v545
        %v612 = vpack.c.b16 %v611, %v610
        %v614 = vsel %vm502, %v612, 0
        %616 = vmatpush.bf16.msra.mxu0 0
        %617 = vmatpush.bf16.msra.mxu0 0
        %618 = vmatpush.bf16.msra.mxu0 0
        %619 = vmatpush.bf16.msra.mxu0 0
        %620 = vmatpush.bf16.msra.mxu0 0
        %621 = vmatpush.bf16.msra.mxu0 0
        %622 = vmatpush.bf16.msra.mxu0 0
        %623 = vmatpush.bf16.msra.mxu0 %v542
        %624 = vmatmul.bf16.gmra.mxu0 %v614
        %v625 = vpop.f32.mrf.mxu0
        %v626 = vadd.f32 %v590, %v625
        %v627 = vpop.f32.mrf.mxu0
        %v628 = vadd.f32 %v592, %v627
        %629 = vdwg.mxu0
        %630 = vmatpush.bf16.msra.mxu0 0
        %631 = vmatpush.bf16.msra.mxu0 0
        %632 = vmatpush.bf16.msra.mxu0 0
        %633 = vmatpush.bf16.msra.mxu0 0
        %634 = vmatpush.bf16.msra.mxu0 0
        %635 = vmatpush.bf16.msra.mxu0 0
        %636 = vmatpush.bf16.msra.mxu0 0
        %637 = vmatpush.bf16.msra.mxu0 %v543
        %638 = vmatmul.bf16.gmra.mxu0 %v614
        %v639 = vpop.f32.mrf.mxu0
        %v640 = vadd.f32 %v604, %v639
        %v641 = vpop.f32.mrf.mxu0
        %v642 = vadd.f32 %v606, %v641
        %643 = vdwg.mxu0
        %v644 = vld [vmem:[%s4] sm:$0xff]
        %v645 = vld [vmem:[%s4 + $0x8] sm:$0xff]
        %647 = vset.pattern.permute.xlu0 0
        %648 = vperm.xlu0 %647, %v644
        %v649 = vpop.permute.xlu0 %648
        %652 = vset.pattern.permute.xlu0 0
        %653 = vperm.xlu0 %652, %v645
        %v654 = vpop.permute.xlu0 %653
        %v656 = vadd.f32 %v626, %v649
        %v657 = vadd.f32 %v640, %v649
        %v658 = vadd.f32 %v628, %v654
        %v659 = vadd.f32 %v642, %v654
        %v660 = vmax.f32 %v656, 0.0
        %v661 = vmax.f32 %v657, 0.0
        %v662 = vmax.f32 %v658, 0.0
        %v663 = vmax.f32 %v659, 0.0
        %664 = vst [vmem:[#allocation3] sm:$0xff] %v660
        %665 = vst [vmem:[#allocation3 + $0x8] sm:$0xff] %v661
        %666 = vst [vmem:[#allocation3 + $0x18] sm:$0xff] %v662
        %667 = vst [vmem:[#allocation3 + $0x20] sm:$0xff] %v663
        %v668 = vld [vmem:[#allocation3] sm:$0xff]
        %v669 = vld [vmem:[#allocation3 + $0x8] sm:$0xff]
        %v670 = vld [vmem:[#allocation3 + $0x18] sm:$0xff]
        %v671 = vld [vmem:[#allocation3 + $0x20] sm:$0xff]
        %v672 = vpack.c.bf16 %v670, %v668
        %v673 = vpack.c.bf16 %v671, %v669
        %v674 = vld [vmem:[%s5] sm:$0xf]
        %v675 = vld [vmem:[%s5 + $0x4] sm:$0xf]
        %v676 = vld [vmem:[#allocation3] sm:$0xff]
        %v677 = vld [vmem:[#allocation3 + $0x8] sm:$0xff]
        %v678 = vld [vmem:[#allocation3 + $0x10] sm:$0xff]
        %v679 = vld [vmem:[#allocation3 + $0x18] sm:$0xff]
        %v680 = vld [vmem:[#allocation3 + $0x20] sm:$0xff]
        %v681 = vld [vmem:[#allocation3 + $0x28] sm:$0xff]
        %v682 = vpack.c.bf16 %v679, %v676
        %v683 = vpack.c.bf16 %v680, %v677
        %v684 = vpack.c.bf16 %v681, %v678
        %s685 = scalar_lea.vmem %s5, 8
        %v686 = vld [vmem:[%s685] sm:$0xf]
        %v687 = vld [vmem:[%s685 + $0x4] sm:$0xf]
        %v690 = vunpack.c.l.b16 %v686
        %v691 = vunpack.c.l.b16 %v687
        %v692 = vpack.c.b16 %v691, %v690
        %696 = vrot.lane.b32.xlu0 %v682, 126
        %v697 = vpop.permute.xlu0 %696
        %698 = vrot.lane.b32.xlu0 %v683, 126
        %v699 = vpop.permute.xlu0 %698
        %700 = vrot.lane.b32.xlu0 %v684, 126
        %v701 = vpop.permute.xlu0 %700
        %vm702 = vcmask 1031168
        %v703 = vsel %vm702, %v697, %v699
        %v704 = vsel %vm702, %v699, %v701
        %v708 = vsel %vm502, %v692, 0
        %710 = vmatpush.bf16.msra.mxu0 0
        %711 = vmatpush.bf16.msra.mxu0 0
        %712 = vmatpush.bf16.msra.mxu0 0
        %713 = vmatpush.bf16.msra.mxu0 0
        %714 = vmatpush.bf16.msra.mxu0 0
        %715 = vmatpush.bf16.msra.mxu0 0
        %716 = vmatpush.bf16.msra.mxu0 0
        %717 = vmatpush.bf16.msra.mxu0 %v703
        %718 = vmatmul.bf16.gmra.mxu0 %v708
        %v719 = vpop.f32.mrf.mxu0
        %v720 = vadd.f32 0.0, %v719
        %v721 = vpop.f32.mrf.mxu0
        %v722 = vadd.f32 0.0, %v721
        %723 = vdwg.mxu0
        %724 = vmatpush.bf16.msra.mxu0 0
        %725 = vmatpush.bf16.msra.mxu0 0
        %726 = vmatpush.bf16.msra.mxu0 0
        %727 = vmatpush.bf16.msra.mxu0 0
        %728 = vmatpush.bf16.msra.mxu0 0
        %729 = vmatpush.bf16.msra.mxu0 0
        %730 = vmatpush.bf16.msra.mxu0 0
        %731 = vmatpush.bf16.msra.mxu0 %v704
        %732 = vmatmul.bf16.gmra.mxu0 %v708
        %v733 = vpop.f32.mrf.mxu0
        %v734 = vadd.f32 0.0, %v733
        %v735 = vpop.f32.mrf.mxu0
        %v736 = vadd.f32 0.0, %v735
        %737 = vdwg.mxu0
        %v740 = vunpack.c.l.b16 %v674
        %v741 = vunpack.c.l.b16 %v675
        %v742 = vpack.c.b16 %v741, %v740
        %v744 = vsel %vm502, %v742, 0
        %746 = vmatpush.bf16.msra.mxu0 0
        %747 = vmatpush.bf16.msra.mxu0 0
        %748 = vmatpush.bf16.msra.mxu0 0
        %749 = vmatpush.bf16.msra.mxu0 0
        %750 = vmatpush.bf16.msra.mxu0 0
        %751 = vmatpush.bf16.msra.mxu0 0
        %752 = vmatpush.bf16.msra.mxu0 0
        %753 = vmatpush.bf16.msra.mxu0 %v672
        %754 = vmatmul.bf16.gmra.mxu0 %v744
        %v755 = vpop.f32.mrf.mxu0
        %v756 = vadd.f32 %v720, %v755
        %v757 = vpop.f32.mrf.mxu0
        %v758 = vadd.f32 %v722, %v757
        %759 = vdwg.mxu0
        %760 = vmatpush.bf16.msra.mxu0 0
        %761 = vmatpush.bf16.msra.mxu0 0
        %762 = vmatpush.bf16.msra.mxu0 0
        %763 = vmatpush.bf16.msra.mxu0 0
        %764 = vmatpush.bf16.msra.mxu0 0
        %765 = vmatpush.bf16.msra.mxu0 0
        %766 = vmatpush.bf16.msra.mxu0 0
        %767 = vmatpush.bf16.msra.mxu0 %v673
        %768 = vmatmul.bf16.gmra.mxu0 %v744
        %v769 = vpop.f32.mrf.mxu0
        %v770 = vadd.f32 %v734, %v769
        %v771 = vpop.f32.mrf.mxu0
        %v772 = vadd.f32 %v736, %v771
        %773 = vdwg.mxu0
        %v774 = vld [vmem:[%s6] sm:$0xff]
        %v775 = vld [vmem:[%s6 + $0x8] sm:$0xff]
        %777 = vset.pattern.permute.xlu0 0
        %778 = vperm.xlu0 %777, %v774
        %v779 = vpop.permute.xlu0 %778
        %782 = vset.pattern.permute.xlu0 0
        %783 = vperm.xlu0 %782, %v775
        %v784 = vpop.permute.xlu0 %783
        %v786 = vadd.f32 %v756, %v779
        %v787 = vadd.f32 %v770, %v779
        %v788 = vadd.f32 %v758, %v784
        %v789 = vadd.f32 %v772, %v784
        %v790 = vmax.f32 %v786, 0.0
        %v791 = vmax.f32 %v787, 0.0
        %v792 = vmax.f32 %v788, 0.0
        %v793 = vmax.f32 %v789, 0.0
        %794 = vst [vmem:[#allocation2] sm:$0xff] %v790
        %795 = vst [vmem:[#allocation2 + $0x8] sm:$0xff] %v791
        %796 = vst [vmem:[#allocation2 + $0x18] sm:$0xff] %v792
        %797 = vst [vmem:[#allocation2 + $0x20] sm:$0xff] %v793
        %v798 = vld [vmem:[#allocation2] sm:$0xff]
        %v799 = vld [vmem:[#allocation2 + $0x8] sm:$0xff]
        %v800 = vld [vmem:[#allocation2 + $0x18] sm:$0xff]
        %v801 = vld [vmem:[#allocation2 + $0x20] sm:$0xff]
        %v802 = vpack.c.bf16 %v800, %v798
        %v803 = vpack.c.bf16 %v801, %v799
        %v804 = vld [vmem:[%s7] sm:$0xf]
        %v805 = vld [vmem:[%s7 + $0x4] sm:$0xf]
        %v806 = vld [vmem:[#allocation2] sm:$0xff]
        %v807 = vld [vmem:[#allocation2 + $0x8] sm:$0xff]
        %v808 = vld [vmem:[#allocation2 + $0x10] sm:$0xff]
        %v809 = vld [vmem:[#allocation2 + $0x18] sm:$0xff]
        %v810 = vld [vmem:[#allocation2 + $0x20] sm:$0xff]
        %v811 = vld [vmem:[#allocation2 + $0x28] sm:$0xff]
        %v812 = vpack.c.bf16 %v809, %v806
        %v813 = vpack.c.bf16 %v810, %v807
        %v814 = vpack.c.bf16 %v811, %v808
        %s815 = scalar_lea.vmem %s7, 8
        %v816 = vld [vmem:[%s815] sm:$0xf]
        %v817 = vld [vmem:[%s815 + $0x4] sm:$0xf]
        %v820 = vunpack.c.l.b16 %v816
        %v821 = vunpack.c.l.b16 %v817
        %v822 = vpack.c.b16 %v821, %v820
        %826 = vrot.lane.b32.xlu0 %v812, 124
        %v827 = vpop.permute.xlu0 %826
        %828 = vrot.lane.b32.xlu0 %v813, 124
        %v829 = vpop.permute.xlu0 %828
        %830 = vrot.lane.b32.xlu0 %v814, 124
        %v831 = vpop.permute.xlu0 %830
        %vm832 = vcmask 1014784
        %v833 = vsel %vm832, %v827, %v829
        %v834 = vsel %vm832, %v829, %v831
        %v838 = vsel %vm502, %v822, 0
        %840 = vmatpush.bf16.msra.mxu0 0
        %841 = vmatpush.bf16.msra.mxu0 0
        %842 = vmatpush.bf16.msra.mxu0 0
        %843 = vmatpush.bf16.msra.mxu0 0
        %844 = vmatpush.bf16.msra.mxu0 0
        %845 = vmatpush.bf16.msra.mxu0 0
        %846 = vmatpush.bf16.msra.mxu0 0
        %847 = vmatpush.bf16.msra.mxu0 %v833
        %848 = vmatmul.bf16.gmra.mxu0 %v838
        %v849 = vpop.f32.mrf.mxu0
        %v850 = vadd.f32 0.0, %v849
        %v851 = vpop.f32.mrf.mxu0
        %v852 = vadd.f32 0.0, %v851
        %853 = vdwg.mxu0
        %854 = vmatpush.bf16.msra.mxu0 0
        %855 = vmatpush.bf16.msra.mxu0 0
        %856 = vmatpush.bf16.msra.mxu0 0
        %857 = vmatpush.bf16.msra.mxu0 0
        %858 = vmatpush.bf16.msra.mxu0 0
        %859 = vmatpush.bf16.msra.mxu0 0
        %860 = vmatpush.bf16.msra.mxu0 0
        %861 = vmatpush.bf16.msra.mxu0 %v834
        %862 = vmatmul.bf16.gmra.mxu0 %v838
        %v863 = vpop.f32.mrf.mxu0
        %v864 = vadd.f32 0.0, %v863
        %v865 = vpop.f32.mrf.mxu0
        %v866 = vadd.f32 0.0, %v865
        %867 = vdwg.mxu0
        %v870 = vunpack.c.l.b16 %v804
        %v871 = vunpack.c.l.b16 %v805
        %v872 = vpack.c.b16 %v871, %v870
        %v874 = vsel %vm502, %v872, 0
        %876 = vmatpush.bf16.msra.mxu0 0
        %877 = vmatpush.bf16.msra.mxu0 0
        %878 = vmatpush.bf16.msra.mxu0 0
        %879 = vmatpush.bf16.msra.mxu0 0
        %880 = vmatpush.bf16.msra.mxu0 0
        %881 = vmatpush.bf16.msra.mxu0 0
        %882 = vmatpush.bf16.msra.mxu0 0
        %883 = vmatpush.bf16.msra.mxu0 %v802
        %884 = vmatmul.bf16.gmra.mxu0 %v874
        %v885 = vpop.f32.mrf.mxu0
        %v886 = vadd.f32 %v850, %v885
        %v887 = vpop.f32.mrf.mxu0
        %v888 = vadd.f32 %v852, %v887
        %889 = vdwg.mxu0
        %890 = vmatpush.bf16.msra.mxu0 0
        %891 = vmatpush.bf16.msra.mxu0 0
        %892 = vmatpush.bf16.msra.mxu0 0
        %893 = vmatpush.bf16.msra.mxu0 0
        %894 = vmatpush.bf16.msra.mxu0 0
        %895 = vmatpush.bf16.msra.mxu0 0
        %896 = vmatpush.bf16.msra.mxu0 0
        %897 = vmatpush.bf16.msra.mxu0 %v803
        %898 = vmatmul.bf16.gmra.mxu0 %v874
        %v899 = vpop.f32.mrf.mxu0
        %v900 = vadd.f32 %v864, %v899
        %v901 = vpop.f32.mrf.mxu0
        %v902 = vadd.f32 %v866, %v901
        %903 = vdwg.mxu0
        %v904 = vld [vmem:[%s8] sm:$0xff]
        %v905 = vld [vmem:[%s8 + $0x8] sm:$0xff]
        %907 = vset.pattern.permute.xlu0 0
        %908 = vperm.xlu0 %907, %v904
        %v909 = vpop.permute.xlu0 %908
        %912 = vset.pattern.permute.xlu0 0
        %913 = vperm.xlu0 %912, %v905
        %v914 = vpop.permute.xlu0 %913
        %v916 = vadd.f32 %v886, %v909
        %v917 = vadd.f32 %v900, %v909
        %v918 = vadd.f32 %v888, %v914
        %v919 = vadd.f32 %v902, %v914
        %v920 = vmax.f32 %v916, 0.0
        %v921 = vmax.f32 %v917, 0.0
        %v922 = vmax.f32 %v918, 0.0
        %v923 = vmax.f32 %v919, 0.0
        %924 = vst [vmem:[#allocation3] sm:$0xff] %v920
        %925 = vst [vmem:[#allocation3 + $0x8] sm:$0xff] %v921
        %926 = vst [vmem:[#allocation3 + $0x18] sm:$0xff] %v922
        %927 = vst [vmem:[#allocation3 + $0x20] sm:$0xff] %v923
        %v928 = vld [vmem:[#allocation3] sm:$0xff]
        %v929 = vld [vmem:[#allocation3 + $0x18] sm:$0xff]
        %930 = vst [vmem:[%s460] sm:$0xff] %v928
        %931 = vst [vmem:[%s460 + $0x8] sm:$0xff] %v929
        %v932 = vld [vmem:[%s9] sm:$0xf]
        %v933 = vld [vmem:[%s9 + $0x4] sm:$0xf]
        %v934 = vpack.c.bf16 %v929, %v928
        %v935 = vld [vmem:[%s10] sm:$0xff]
        %v936 = vld [vmem:[%s10 + $0x8] sm:$0xff]
        %938 = vset.pattern.permute.xlu0 0
        %939 = vperm.xlu0 %938, %v935
        %v940 = vpop.permute.xlu0 %939
        %943 = vset.pattern.permute.xlu0 0
        %944 = vperm.xlu0 %943, %v936
        %v945 = vpop.permute.xlu0 %944
        %v949 = vunpack.c.l.b16 %v932
        %v950 = vunpack.c.l.b16 %v933
        %v951 = vpack.c.b16 %v950, %v949
        %v953 = vsel %vm502, %v951, 0
        %955 = vmatpush.bf16.msra.mxu0 0
        %956 = vmatpush.bf16.msra.mxu0 0
        %957 = vmatpush.bf16.msra.mxu0 0
        %958 = vmatpush.bf16.msra.mxu0 0
        %959 = vmatpush.bf16.msra.mxu0 0
        %960 = vmatpush.bf16.msra.mxu0 0
        %961 = vmatpush.bf16.msra.mxu0 0
        %962 = vmatpush.bf16.msra.mxu0 %v934
        %963 = vmatmul.bf16.gmra.mxu0 %v953
        %v964 = vpop.f32.mrf.mxu0
        %v965 = vadd.f32 %v940, %v964
        %v966 = vpop.f32.mrf.mxu0
        %v967 = vadd.f32 %v945, %v966
        %968 = vdwg.mxu0
        %969 = vst [vmem:[%s453] sm:$0xff] %v965
        %970 = vst [vmem:[%s453 + $0x8] sm:$0xff] %v967
        %s971 = sand.u32 %s291, 1
        %s972 = scalar_lea.sflag [#allocation6], %s971
        %s973 = sand.u32 %s291, 1
        %s974 = smul.addr %s973, 16
        %s975 = scalar_lea.vmem [#allocation7], %s974
        %s976 = sand.u32 %s319, 1
        %s977 = scalar_lea.sflag [#allocation9], %s976
        %s978 = sand.u32 %s319, 1
        %s979 = smul.addr %s978, 16
        %s980 = scalar_lea.vmem [#allocation8], %s979
        // Predicated region
        $region69: #{tpu_custom_call.1} parent=63 // pred_check
          %p981 = pneg %p301
        $region70: #{tpu_custom_call.1} parent=63 // pred_check_branch
          %983 = sbr.rel (%p981) target = $region72
        $region71: #{tpu_custom_call.1} parent=63 // pred_region
          %985 = vsyncadd %s972, 0
          %s986 = smul.addr %s36, 2
          %s987 = sadd.s32 %s35, %s986
          %s988 = smul.addr %s987, 8
          %s989 = scalar_lea.hbm %s11, %s988
          %s990 = sshll.u32 %s975, 4
          %s991 = int_to_ptr.vmem [resolvable:$true] %s990
          %s992 = sshll.u32 %s989, 4
          %s993 = int_to_ptr.hbm [resolvable:$true] %s992
          %998 = dma.vmem_to_hbm [thread:$0]  %s991, 256, %s993, %s972, 128, 128, 8
        $region72: #{tpu_custom_call.1} parent=63 // pred_fallthru
          _
        // Predicated region
        $region73: #{tpu_custom_call.1} parent=63 // pred_check
          %p999 = pneg %p329
        $region74: #{tpu_custom_call.1} parent=63 // pred_check_branch
          %1001 = sbr.rel (%p999) target = $region76
        $region75: #{tpu_custom_call.1} parent=63 // pred_region
          %1003 = vsyncadd %s977, 0
          %s1004 = smul.addr %s36, 2
          %s1005 = sadd.s32 %s35, %s1004
          %s1006 = smul.addr %s1005, 8
          %s1007 = scalar_lea.hbm %s12, %s1006
          %s1008 = sshll.u32 %s980, 4
          %s1009 = int_to_ptr.vmem [resolvable:$true] %s1008
          %s1010 = sshll.u32 %s1007, 4
          %s1011 = int_to_ptr.hbm [resolvable:$true] %s1010
          %1016 = dma.vmem_to_hbm [thread:$0]  %s1009, 256, %s1011, %s977, 128, 128, 8
        $region76: #{tpu_custom_call.1} parent=63 // pred_fallthru
          _
      $region64: #{tpu_custom_call.1} parent=5 // pred_fallthru
        _
      %p1017 = scmp.le.s32.totalorder 2, %s26
      // Predicated region
      $region77: #{tpu_custom_call.1} parent=5 // pred_check
        %p1018 = pneg %p1017
      $region78: #{tpu_custom_call.1} parent=5 // pred_check_branch
        %1020 = sbr.rel (%p1018) target = $region80
      $region79: #{tpu_custom_call.1} parent=5 // pred_region
        %s1021 = ssub.s32 %s26, 2
        // Predicated region
        $region81: #{tpu_custom_call.1} parent=79 // pred_check
          %p1022 = pneg %p307
        $region82: #{tpu_custom_call.1} parent=79 // pred_check_branch
          %1024 = sbr.rel (%p1022) target = $region84
        $region83: #{tpu_custom_call.1} parent=79 // pred_region
          %s1025 = sand.u32 %s292, 1
          %s1026 = scalar_lea.sflag [#allocation6], %s1025
          %s1027 = sand.u32 %s292, 1
          %s1028 = smul.addr %s1027, 16
          %s1029 = scalar_lea.vmem [#allocation7], %s1028
          %1031 = dma.done %s1026, 256
        $region84: #{tpu_custom_call.1} parent=79 // pred_fallthru
          _
        // Predicated region
        $region85: #{tpu_custom_call.1} parent=79 // pred_check
          %p1032 = pneg %p335
        $region86: #{tpu_custom_call.1} parent=79 // pred_check_branch
          %1034 = sbr.rel (%p1032) target = $region88
        $region87: #{tpu_custom_call.1} parent=79 // pred_region
          %s1035 = sand.u32 %s320, 1
          %s1036 = scalar_lea.sflag [#allocation9], %s1035
          %s1037 = sand.u32 %s320, 1
          %s1038 = smul.addr %s1037, 16
          %s1039 = scalar_lea.vmem [#allocation8], %s1038
          %1041 = dma.done %s1036, 256
        $region88: #{tpu_custom_call.1} parent=79 // pred_fallthru
          _
      $region80: #{tpu_custom_call.1} parent=5 // pred_fallthru
        _
    $region6: #{tpu_custom_call.1} parent=1 // loop_footer
      %s30 = sadd.s32 1, %s26
    $region7: #{tpu_custom_call.1} parent=1 // loop_footer_branch
      %25 = sbr.rel target = $region3
    $region8: #{tpu_custom_call.1} parent=1 // loop_exit
      _
    %1042 = vsyncpa [#allocation5], 1
    %s1043 = scalar_lea.sflag [#allocation5], 1
    %1044 = vsyncpa %s1043, 1
    %1045 = vsyncpa [#allocation6], 1
    %s1046 = scalar_lea.sflag [#allocation6], 1
    %1047 = vsyncpa %s1046, 1
    %1048 = vsyncpa [#allocation9], 1
    %s1049 = scalar_lea.sflag [#allocation9], 1
    %1050 = vsyncpa %s1049, 1

</llo_original>
